<compile_context>
chip_gen: v7x
topology: tpu7x:2x2x1
jax: 0.10.0
libtpu: 0.0.40
codegen_flags: <defaults>
</compile_context>

<pallas_src>
import functools

import jax
import jax.numpy as jnp
from jax.experimental import pallas as pl
from jax.experimental.pallas import tpu as pltpu


def _round_up(x: int, m: int) -> int:
    return ((x + m - 1) // m) * m


def _pad_2d(a, rows, cols):
    out = jnp.zeros((rows, cols), a.dtype)
    return out.at[:a.shape[0], :a.shape[1]].set(a)


def _discriminator_kernel(x_ref, w1_ref, w2_ref, w3_ref, w4_ref, b_ref, o_ref,
                          *, out_cols):
    h_p = w1_ref.shape[1]

    # Merged biases: rows 0..3 of an (8, width) f32 array hold b1..b4.
    b = b_ref[...]
    b1 = b[0:1, :h_p]
    b2 = b[1:2, :h_p]
    b3 = b[2:3, :h_p]
    b4 = b[3:4, :out_cols]

    # Layer 1: in-kernel f32->bf16 cast, bf16 MXU matmul, f32 accumulate.
    x = x_ref[...].astype(jnp.bfloat16)
    h = jnp.dot(x, w1_ref[...], preferred_element_type=jnp.float32)
    h = jnp.maximum(h + b1, 0.0)
    # Layer 2
    h = jnp.dot(h.astype(jnp.bfloat16), w2_ref[...],
                preferred_element_type=jnp.float32)
    h = jnp.maximum(h + b2, 0.0)
    # Layer 3
    h = jnp.dot(h.astype(jnp.bfloat16), w3_ref[...],
                preferred_element_type=jnp.float32)
    h = jnp.maximum(h + b3, 0.0)
    # Output layer: padded 128-lane matmul for the MXU, but only the real logit
    # columns are stored (narrow writeback instead of a 128-wide f32 slab).
    out = jnp.dot(h.astype(jnp.bfloat16), w4_ref[...],
                  preferred_element_type=jnp.float32)
    o_ref[...] = (out[:, :out_cols] + b4).astype(o_ref.dtype)


@functools.partial(jax.jit, static_argnames=("batch_tile", "mxu_width"))
def discriminator_forward(x, params, *, batch_tile=None, mxu_width=256):
    """x: [B, input_size] f32; params: w1..w4 as [in, out], b1..b4 as [1, out]."""
    B, input_size = x.shape
    hidden_size = params["w1"].shape[1]
    output_size = params["w4"].shape[1]

    # Padded feature dims for the MXU.  hidden<=128 stays at 128; larger hidden
    # rounds to mxu_width (256 for the 256-wide MXU on v6e/v7x; use 128 on v5e).
    h_p = 128 if hidden_size <= 128 else _round_up(hidden_size, mxu_width)
    out_p = _round_up(output_size, 128)
    bw = max(h_p, out_p)

    # Batch tile: multiple of 8.  For B > 512 aim for >=4 grid steps (>=2 per
    # TensorCore on v7x megacore) with tiles capped at 2048 rows to amortize
    # the ~0.35us per-grid-step overhead.
    b8 = _round_up(B, 8)
    if batch_tile is not None:
        tb = max(8, _round_up(min(batch_tile, b8), 8))
    elif b8 <= 512:
        tb = b8
    else:
        tb = min(2048, _round_up(pl.cdiv(b8, 4), 8))
    grid = (pl.cdiv(B, tb),)

    # Zero-padded bf16 weights.  Zero weight/bias padding keeps the padded
    # hidden lanes identically zero through every ReLU.
    w1 = _pad_2d(params["w1"], input_size, h_p).astype(jnp.bfloat16)
    w2 = _pad_2d(params["w2"], h_p, h_p).astype(jnp.bfloat16)
    w3 = _pad_2d(params["w3"], h_p, h_p).astype(jnp.bfloat16)
    w4 = _pad_2d(params["w4"], h_p, out_p).astype(jnp.bfloat16)

    # Merged resident bias array: rows 0..3 = b1..b4, zero-padded to (8, bw).
    bias = jnp.zeros((8, bw), jnp.float32)
    bias = bias.at[0, :hidden_size].set(params["b1"].reshape(-1).astype(jnp.float32))
    bias = bias.at[1, :hidden_size].set(params["b2"].reshape(-1).astype(jnp.float32))
    bias = bias.at[2, :hidden_size].set(params["b3"].reshape(-1).astype(jnp.float32))
    bias = bias.at[3, :output_size].set(params["b4"].reshape(-1).astype(jnp.float32))

    # Block specs: x/out tiled over the batch grid; weights/biases resident
    # (constant index_map -> DMA'd once, kept in VMEM across grid steps).
    resident = lambda i: (0, 0)
    in_specs = [
        pl.BlockSpec((tb, input_size), lambda i: (i, 0)),   # x, f32, unpadded K
        pl.BlockSpec((input_size, h_p), resident),          # w1
        pl.BlockSpec((h_p, h_p), resident),                 # w2
        pl.BlockSpec((h_p, h_p), resident),                 # w3
        pl.BlockSpec((h_p, out_p), resident),               # w4
        pl.BlockSpec((8, bw), resident),                    # merged biases
    ]
    out_spec = pl.BlockSpec((tb, output_size), lambda i: (i, 0))

    # VMEM budget (conservative: count 2 pipeline buffers for everything).
    in_lanes = _round_up(input_size, 128)
    out_lanes = _round_up(output_size, 128)
    weight_bytes = 2 * 2 * (input_size * h_p + 2 * h_p * h_p + h_p * out_p)
    bias_bytes = 2 * 4 * 8 * bw
    act_bytes = 2 * tb * in_lanes * 4 + 2 * tb * out_lanes * 4 + 4 * tb * h_p * 4
    needed = weight_bytes + bias_bytes + act_bytes + (1 << 20)
    # Cap at 48 MiB: leaves headroom under v7x's 64 MiB physical VMEM.
    vmem_limit = int(min(48 * 1024 * 1024, max(32 * 1024 * 1024, 2 * needed)))

    flops = 2 * B * (input_size * h_p + 2 * h_p * h_p + h_p * out_p)
    bytes_accessed = (B * input_size * 4                                   # x (f32)
                      + (input_size * h_p + 2 * h_p * h_p + h_p * out_p) * 2  # W bf16
                      + 8 * bw * 4                                         # biases
                      + B * output_size * 4)                               # logits
    cost = pl.CostEstimate(flops=flops, transcendentals=0,
                           bytes_accessed=bytes_accessed)

    out = pl.pallas_call(
        functools.partial(_discriminator_kernel, out_cols=output_size),
        out_shape=jax.ShapeDtypeStruct((B, output_size), jnp.float32),
        grid=grid,
        in_specs=in_specs,
        out_specs=out_spec,
        compiler_params=pltpu.CompilerParams(
            dimension_semantics=("parallel",),
            vmem_limit_bytes=vmem_limit),
        cost_estimate=cost,
    )(x.astype(jnp.float32), w1, w2, w3, w4, bias)
    return out


def init_discriminator_params(key, input_size, hidden_size, output_size=1):
    """Deterministic init mirroring the PyTorch module's shapes/init.

    PyTorch Linear stores weight as [out, in]; we build [out, in] then transpose
    to [in, out] for the kernel.  First three layers use kaiming-uniform scaling
    (nn.init.kaiming_uniform, a=0), final layer uses default Linear init.
    """
    keys = jax.random.split(key, 8)
    dims = [(input_size, hidden_size),
            (hidden_size, hidden_size),
            (hidden_size, hidden_size),
            (hidden_size, output_size)]
    params = {}
    for i, (fan_in, fan_out) in enumerate(dims):
        kw, kb = keys[2 * i], keys[2 * i + 1]
        if i < 3:
            bound_w = float(jnp.sqrt(6.0 / fan_in))     # kaiming_uniform, a=0
        else:
            bound_w = 1.0 / float(jnp.sqrt(fan_in))     # default nn.Linear
        w_torch_layout = jax.random.uniform(
            kw, (fan_out, fan_in), jnp.float32, -bound_w, bound_w)
        bound_b = 1.0 / float(jnp.sqrt(fan_in))
        b = jax.random.uniform(kb, (1, fan_out), jnp.float32, -bound_b, bound_b)
        params[f"w{i + 1}"] = jnp.asarray(w_torch_layout.T)  # [in, out]
        params[f"b{i + 1}"] = b                               # [1, out]
    return params


def _reference_forward(x, params):
    h = jnp.maximum(x @ params["w1"] + params["b1"], 0.0)
    h = jnp.maximum(h @ params["w2"] + params["b2"], 0.0)
    h = jnp.maximum(h @ params["w3"] + params["b3"], 0.0)
    return h @ params["w4"] + params["b4"]


if __name__ == "__main__":
    key = jax.random.PRNGKey(0)
    k_x, k_p = jax.random.split(key)

    batch = 64
    input_size = 16
    hidden_size = 32
    output_size = 1

    x = jax.random.normal(k_x, (batch, input_size), jnp.float32)
    params = init_discriminator_params(k_p, input_size, hidden_size, output_size)

    # batch_tile=32 so the 1-D batch grid actually has >1 iteration in the test.
    out = discriminator_forward(x, params, batch_tile=32)
    out = jax.block_until_ready(out)

    ref = _reference_forward(x, params)
    assert out.shape == (batch, output_size), out.shape
    # bf16 matmul operands -> loosened tolerance vs. the f32 reference.
    assert jnp.allclose(out, ref, atol=5e-2, rtol=5e-2), float(
        jnp.max(jnp.abs(out - ref)))

    print("KERNEL_OK")
</pallas_src>

<mosaic_0001>
module attributes {stable_mosaic.version = 11 : i64} {
  func.func @_discriminator_kernel(%arg0: i32, %arg1: memref<32x16xf32, #tpu.memory_space<vmem>>, %arg2: memref<16x128xbf16, #tpu.memory_space<vmem>>, %arg3: memref<128x128xbf16, #tpu.memory_space<vmem>>, %arg4: memref<128x128xbf16, #tpu.memory_space<vmem>>, %arg5: memref<128x128xbf16, #tpu.memory_space<vmem>>, %arg6: memref<8x128xf32, #tpu.memory_space<vmem>>, %arg7: memref<32x1xf32, #tpu.memory_space<vmem>>) attributes {dimension_semantics = [#tpu.dimension_semantics<parallel>], iteration_bounds = array<i64: 2>, scalar_prefetch = 0 : i64, scratch_operands = 0 : i64, tpu.core_type = #tpu.core_type<tc>, window_params = [{transform_indices = @transform_0, window_bounds = array<i64: 32, 16>}, {pipeline_mode = #tpu.pipeline_mode<synchronous>, transform_indices = @transform_1, window_bounds = array<i64: 16, 128>}, {pipeline_mode = #tpu.pipeline_mode<synchronous>, transform_indices = @transform_2, window_bounds = array<i64: 128, 128>}, {pipeline_mode = #tpu.pipeline_mode<synchronous>, transform_indices = @transform_3, window_bounds = array<i64: 128, 128>}, {pipeline_mode = #tpu.pipeline_mode<synchronous>, transform_indices = @transform_4, window_bounds = array<i64: 128, 128>}, {pipeline_mode = #tpu.pipeline_mode<synchronous>, transform_indices = @transform_5, window_bounds = array<i64: 8, 128>}, {transform_indices = @transform_6, window_bounds = array<i64: 32, 1>}]} {
    %c0 = arith.constant 0 : index
    %c0_0 = arith.constant 0 : index
    %0 = vector.load %arg6[%c0, %c0_0] : memref<8x128xf32, #tpu.memory_space<vmem>>, vector<8x128xf32>
    %1 = vector.extract_strided_slice %0 {offsets = [0, 0], sizes = [1, 128], strides = [1, 1]} : vector<8x128xf32> to vector<1x128xf32>
    %2 = vector.extract_strided_slice %0 {offsets = [1, 0], sizes = [1, 128], strides = [1, 1]} : vector<8x128xf32> to vector<1x128xf32>
    %3 = vector.extract_strided_slice %0 {offsets = [2, 0], sizes = [1, 128], strides = [1, 1]} : vector<8x128xf32> to vector<1x128xf32>
    %4 = vector.extract_strided_slice %0 {offsets = [3, 0], sizes = [1, 1], strides = [1, 1]} : vector<8x128xf32> to vector<1x1xf32>
    %c0_1 = arith.constant 0 : index
    %c0_2 = arith.constant 0 : index
    %5 = vector.load %arg1[%c0_1, %c0_2] : memref<32x16xf32, #tpu.memory_space<vmem>>, vector<32x16xf32>
    %6 = arith.truncf %5 : vector<32x16xf32> to vector<32x16xbf16>
    %c0_3 = arith.constant 0 : index
    %c0_4 = arith.constant 0 : index
    %7 = vector.load %arg2[%c0_3, %c0_4] : memref<16x128xbf16, #tpu.memory_space<vmem>>, vector<16x128xbf16>
    %cst = arith.constant dense<0.000000e+00> : vector<32x128xf32>
    %8 = tpu.matmul %6, %7, %cst {dimension_numbers = #tpu.dot_dimension_numbers<[1], [0], [0], [1], [0, 0, 1, 1], [], []>} : vector<32x16xbf16>, vector<16x128xbf16>, vector<32x128xf32> -> vector<32x128xf32>
    %9 = vector.broadcast %1 : vector<1x128xf32> to vector<32x128xf32>
    %10 = arith.addf %8, %9 : vector<32x128xf32>
    %cst_5 = arith.constant 0.000000e+00 : f32
    %11 = vector.broadcast %cst_5 : f32 to vector<32x128xf32>
    %12 = arith.maximumf %10, %11 : vector<32x128xf32>
    %13 = arith.truncf %12 : vector<32x128xf32> to vector<32x128xbf16>
    %c0_6 = arith.constant 0 : index
    %c0_7 = arith.constant 0 : index
    %14 = vector.load %arg3[%c0_6, %c0_7] : memref<128x128xbf16, #tpu.memory_space<vmem>>, vector<128x128xbf16>
    %cst_8 = arith.constant dense<0.000000e+00> : vector<32x128xf32>
    %15 = tpu.matmul %13, %14, %cst_8 {dimension_numbers = #tpu.dot_dimension_numbers<[1], [0], [0], [1], [0, 0, 1, 1], [], []>} : vector<32x128xbf16>, vector<128x128xbf16>, vector<32x128xf32> -> vector<32x128xf32>
    %16 = vector.broadcast %2 : vector<1x128xf32> to vector<32x128xf32>
    %17 = arith.addf %15, %16 : vector<32x128xf32>
    %cst_9 = arith.constant 0.000000e+00 : f32
    %18 = vector.broadcast %cst_9 : f32 to vector<32x128xf32>
    %19 = arith.maximumf %17, %18 : vector<32x128xf32>
    %20 = arith.truncf %19 : vector<32x128xf32> to vector<32x128xbf16>
    %c0_10 = arith.constant 0 : index
    %c0_11 = arith.constant 0 : index
    %21 = vector.load %arg4[%c0_10, %c0_11] : memref<128x128xbf16, #tpu.memory_space<vmem>>, vector<128x128xbf16>
    %cst_12 = arith.constant dense<0.000000e+00> : vector<32x128xf32>
    %22 = tpu.matmul %20, %21, %cst_12 {dimension_numbers = #tpu.dot_dimension_numbers<[1], [0], [0], [1], [0, 0, 1, 1], [], []>} : vector<32x128xbf16>, vector<128x128xbf16>, vector<32x128xf32> -> vector<32x128xf32>
    %23 = vector.broadcast %3 : vector<1x128xf32> to vector<32x128xf32>
    %24 = arith.addf %22, %23 : vector<32x128xf32>
    %cst_13 = arith.constant 0.000000e+00 : f32
    %25 = vector.broadcast %cst_13 : f32 to vector<32x128xf32>
    %26 = arith.maximumf %24, %25 : vector<32x128xf32>
    %27 = arith.truncf %26 : vector<32x128xf32> to vector<32x128xbf16>
    %c0_14 = arith.constant 0 : index
    %c0_15 = arith.constant 0 : index
    %28 = vector.load %arg5[%c0_14, %c0_15] : memref<128x128xbf16, #tpu.memory_space<vmem>>, vector<128x128xbf16>
    %cst_16 = arith.constant dense<0.000000e+00> : vector<32x128xf32>
    %29 = tpu.matmul %27, %28, %cst_16 {dimension_numbers = #tpu.dot_dimension_numbers<[1], [0], [0], [1], [0, 0, 1, 1], [], []>} : vector<32x128xbf16>, vector<128x128xbf16>, vector<32x128xf32> -> vector<32x128xf32>
    %30 = vector.extract_strided_slice %29 {offsets = [0, 0], sizes = [32, 1], strides = [1, 1]} : vector<32x128xf32> to vector<32x1xf32>
    %31 = vector.broadcast %4 : vector<1x1xf32> to vector<32x1xf32>
    %32 = arith.addf %30, %31 : vector<32x1xf32>
    %c0_17 = arith.constant 0 : index
    %c0_18 = arith.constant 0 : index
    %33 = vector.load %arg7[%c0_17, %c0_18] : memref<32x1xf32, #tpu.memory_space<vmem>>, vector<32x1xf32>
    tpu.vector_store %arg7[%c0_17, %c0_18], %32 {strides = array<i32>} : memref<32x1xf32, #tpu.memory_space<vmem>>, vector<32x1xf32>,
    return
  }
  func.func @transform_0(%arg0: i32) -> (i32, i32) {
    %c0_i32 = arith.constant 0 : i32
    %c0_i32_0 = arith.constant 0 : i32
    return %arg0, %c0_i32 : i32, i32
  }
  func.func @transform_1(%arg0: i32) -> (i32, i32) {
    %c0_i32 = arith.constant 0 : i32
    %c0_i32_0 = arith.constant 0 : i32
    %c0_i32_1 = arith.constant 0 : i32
    return %c0_i32, %c0_i32_0 : i32, i32
  }
  func.func @transform_2(%arg0: i32) -> (i32, i32) {
    %c0_i32 = arith.constant 0 : i32
    %c0_i32_0 = arith.constant 0 : i32
    %c0_i32_1 = arith.constant 0 : i32
    return %c0_i32, %c0_i32_0 : i32, i32
  }
  func.func @transform_3(%arg0: i32) -> (i32, i32) {
    %c0_i32 = arith.constant 0 : i32
    %c0_i32_0 = arith.constant 0 : i32
    %c0_i32_1 = arith.constant 0 : i32
    return %c0_i32, %c0_i32_0 : i32, i32
  }
  func.func @transform_4(%arg0: i32) -> (i32, i32) {
    %c0_i32 = arith.constant 0 : i32
    %c0_i32_0 = arith.constant 0 : i32
    %c0_i32_1 = arith.constant 0 : i32
    return %c0_i32, %c0_i32_0 : i32, i32
  }
  func.func @transform_5(%arg0: i32) -> (i32, i32) {
    %c0_i32 = arith.constant 0 : i32
    %c0_i32_0 = arith.constant 0 : i32
    %c0_i32_1 = arith.constant 0 : i32
    return %c0_i32, %c0_i32_0 : i32, i32
  }
  func.func @transform_6(%arg0: i32) -> (i32, i32) {
    %c0_i32 = arith.constant 0 : i32
    %c0_i32_0 = arith.constant 0 : i32
    return %arg0, %c0_i32 : i32, i32
  }
}

</mosaic_0001>

<llo_original>
// kernel: discriminator_forward.1
$region0: #{discriminator_forward.1}
  #allocation0 [shape = 'u32[]', space=smem, size = 0x4, offset = 0x4, fixed_abs, tag = 'smem constant byte address 0x4 - core index']
  #allocation1 [shape = 'u32[144,128]{1,0:T(1,128)}', space=vmem, size = 0x12000, scoped, tag = 'internal scratch']
  %s0 = inlined_call_operand.vmem [shape: f32[64,16], index: 0, kind: input, shape index: {}]
  %s1 = inlined_call_operand.vmem [shape: bf16[16,128], index: 1, kind: input, shape index: {}]
  %s2 = inlined_call_operand.vmem [shape: bf16[128,128], index: 2, kind: input, shape index: {}]
  %s3 = inlined_call_operand.vmem [shape: bf16[128,128], index: 3, kind: input, shape index: {}]
  %s4 = inlined_call_operand.vmem [shape: bf16[128,128], index: 4, kind: input, shape index: {}]
  %s5 = inlined_call_operand.vmem [shape: f32[8,128], index: 5, kind: input, shape index: {}]
  %s6 = inlined_call_operand.vmem [shape: f32[64,1], index: 6, kind: output, shape index: {}]
  %s7 = sld [smem:[#allocation0]]
  $region57: #{discriminator_forward.1} parent=0
    _
  %s9 = ssub.s32 1, %s7
  %s10 = scalar_select 0, %s9, %s7
  loop: start=0, step=1, limit=4
  $region2: #{discriminator_forward.1} parent=0 // loop_pre_header
    _
  $region3: #{discriminator_forward.1} parent=0 // loop_header
    %s12 = sphi 0, %s16
    %p13 = scmp.ge.s32.totalorder %s12, 4
    %s22 = sphi 0, %s24
    %s25 = sphi 0, %s22
    %s26 = sphi 0, %s25
    %s42 = sphi 0, %s26
    %s46 = sphi 0, %s46
    %s48 = sphi 0, %s46
    %s49 = sphi 0, %s48
    %s63 = sphi 0, %s49
    %s67 = sphi 0, %s67
    %s69 = sphi 0, %s67
    %s70 = sphi 0, %s69
    %s84 = sphi 0, %s70
    %s88 = sphi 0, %s88
    %s90 = sphi 0, %s88
    %s91 = sphi 0, %s90
    %s105 = sphi 0, %s91
    %s109 = sphi 0, %s109
    %s111 = sphi 0, %s109
    %s112 = sphi 0, %s111
    %s126 = sphi 0, %s112
    %s130 = sphi 0, %s130
    %s132 = sphi 0, %s130
    %s133 = sphi 0, %s132
    %s147 = sphi 0, %s133
    %s153 = sphi 0, %s155
    %s156 = sphi 0, %s153
    %s157 = sphi 0, %s156
    %s173 = sphi 0, %s157
  $region4: #{discriminator_forward.1} parent=0 // loop_header_branch
    %15 = sbr.rel (%p13) target = $region8
  $region5: #{discriminator_forward.1} parent=0 // loop_body
    %s17 = ssub.s32 %s12, 1
    %s18 = ssub.s32 %s12, 2
    %s19 = sadd.s32 %s12, 1
    %s20 = ssub.s32 %s12, %s19
    %p21 = scmp.eq.s32.totalorder %s20, 0
    %s23 = sadd.s32 %s22, 1
    %s24 = scalar_select %p21, %s22, %s23
    %p27 = pneg %p21
    %p28 = scmp.eq.s32.totalorder %s12, 1
    %p29 = por %p27, %p28
    %p30 = scmp.ne.s32.totalorder %s22, %s25
    %p31 = scmp.eq.s32.totalorder %s12, 0
    %p32 = por %p30, %p31
    %p33 = scmp.ne.s32.totalorder %s22, %s25
    %p34 = scmp.eq.s32.totalorder %s17, 1
    %p35 = por %p33, %p34
    %p36 = scmp.ne.s32.totalorder %s25, %s26
    %p37 = scmp.eq.s32.totalorder %s17, 0
    %p38 = por %p36, %p37
    %p39 = scmp.ne.s32.totalorder %s25, %s26
    %p40 = scmp.eq.s32.totalorder %s18, 1
    %p41 = por %p39, %p40
    %p43 = scmp.ne.s32.totalorder %s26, %s42
    %p44 = scmp.eq.s32.totalorder %s18, 0
    %p45 = por %p43, %p44
    %s47 = sadd.s32 %s46, 1
    %p50 = scmp.eq.s32.totalorder %s12, 1
    %p51 = scmp.ne.s32.totalorder %s46, %s48
    %p52 = scmp.eq.s32.totalorder %s12, 0
    %p53 = por %p51, %p52
    %p54 = scmp.ne.s32.totalorder %s46, %s48
    %p55 = scmp.eq.s32.totalorder %s17, 1
    %p56 = por %p54, %p55
    %p57 = scmp.ne.s32.totalorder %s48, %s49
    %p58 = scmp.eq.s32.totalorder %s17, 0
    %p59 = por %p57, %p58
    %p60 = scmp.ne.s32.totalorder %s48, %s49
    %p61 = scmp.eq.s32.totalorder %s18, 1
    %p62 = por %p60, %p61
    %p64 = scmp.ne.s32.totalorder %s49, %s63
    %p65 = scmp.eq.s32.totalorder %s18, 0
    %p66 = por %p64, %p65
    %s68 = sadd.s32 %s67, 1
    %p71 = scmp.eq.s32.totalorder %s12, 1
    %p72 = scmp.ne.s32.totalorder %s67, %s69
    %p73 = scmp.eq.s32.totalorder %s12, 0
    %p74 = por %p72, %p73
    %p75 = scmp.ne.s32.totalorder %s67, %s69
    %p76 = scmp.eq.s32.totalorder %s17, 1
    %p77 = por %p75, %p76
    %p78 = scmp.ne.s32.totalorder %s69, %s70
    %p79 = scmp.eq.s32.totalorder %s17, 0
    %p80 = por %p78, %p79
    %p81 = scmp.ne.s32.totalorder %s69, %s70
    %p82 = scmp.eq.s32.totalorder %s18, 1
    %p83 = por %p81, %p82
    %p85 = scmp.ne.s32.totalorder %s70, %s84
    %p86 = scmp.eq.s32.totalorder %s18, 0
    %p87 = por %p85, %p86
    %s89 = sadd.s32 %s88, 1
    %p92 = scmp.eq.s32.totalorder %s12, 1
    %p93 = scmp.ne.s32.totalorder %s88, %s90
    %p94 = scmp.eq.s32.totalorder %s12, 0
    %p95 = por %p93, %p94
    %p96 = scmp.ne.s32.totalorder %s88, %s90
    %p97 = scmp.eq.s32.totalorder %s17, 1
    %p98 = por %p96, %p97
    %p99 = scmp.ne.s32.totalorder %s90, %s91
    %p100 = scmp.eq.s32.totalorder %s17, 0
    %p101 = por %p99, %p100
    %p102 = scmp.ne.s32.totalorder %s90, %s91
    %p103 = scmp.eq.s32.totalorder %s18, 1
    %p104 = por %p102, %p103
    %p106 = scmp.ne.s32.totalorder %s91, %s105
    %p107 = scmp.eq.s32.totalorder %s18, 0
    %p108 = por %p106, %p107
    %s110 = sadd.s32 %s109, 1
    %p113 = scmp.eq.s32.totalorder %s12, 1
    %p114 = scmp.ne.s32.totalorder %s109, %s111
    %p115 = scmp.eq.s32.totalorder %s12, 0
    %p116 = por %p114, %p115
    %p117 = scmp.ne.s32.totalorder %s109, %s111
    %p118 = scmp.eq.s32.totalorder %s17, 1
    %p119 = por %p117, %p118
    %p120 = scmp.ne.s32.totalorder %s111, %s112
    %p121 = scmp.eq.s32.totalorder %s17, 0
    %p122 = por %p120, %p121
    %p123 = scmp.ne.s32.totalorder %s111, %s112
    %p124 = scmp.eq.s32.totalorder %s18, 1
    %p125 = por %p123, %p124
    %p127 = scmp.ne.s32.totalorder %s112, %s126
    %p128 = scmp.eq.s32.totalorder %s18, 0
    %p129 = por %p127, %p128
    %s131 = sadd.s32 %s130, 1
    %p134 = scmp.eq.s32.totalorder %s12, 1
    %p135 = scmp.ne.s32.totalorder %s130, %s132
    %p136 = scmp.eq.s32.totalorder %s12, 0
    %p137 = por %p135, %p136
    %p138 = scmp.ne.s32.totalorder %s130, %s132
    %p139 = scmp.eq.s32.totalorder %s17, 1
    %p140 = por %p138, %p139
    %p141 = scmp.ne.s32.totalorder %s132, %s133
    %p142 = scmp.eq.s32.totalorder %s17, 0
    %p143 = por %p141, %p142
    %p144 = scmp.ne.s32.totalorder %s132, %s133
    %p145 = scmp.eq.s32.totalorder %s18, 1
    %p146 = por %p144, %p145
    %p148 = scmp.ne.s32.totalorder %s133, %s147
    %p149 = scmp.eq.s32.totalorder %s18, 0
    %p150 = por %p148, %p149
    %s151 = ssub.s32 %s12, %s19
    %p152 = scmp.eq.s32.totalorder %s151, 0
    %s154 = sadd.s32 %s153, 1
    %s155 = scalar_select %p152, %s153, %s154
    %p158 = pneg %p152
    %p159 = scmp.eq.s32.totalorder %s12, 1
    %p160 = por %p158, %p159
    %p161 = scmp.ne.s32.totalorder %s153, %s156
    %p162 = scmp.eq.s32.totalorder %s12, 0
    %p163 = por %p161, %p162
    %p164 = scmp.ne.s32.totalorder %s153, %s156
    %p165 = scmp.eq.s32.totalorder %s17, 1
    %p166 = por %p164, %p165
    %p167 = scmp.ne.s32.totalorder %s156, %s157
    %p168 = scmp.eq.s32.totalorder %s17, 0
    %p169 = por %p167, %p168
    %p170 = scmp.ne.s32.totalorder %s156, %s157
    %p171 = scmp.eq.s32.totalorder %s18, 1
    %p172 = por %p170, %p171
    %p174 = scmp.ne.s32.totalorder %s157, %s173
    %p175 = scmp.eq.s32.totalorder %s18, 0
    %p176 = por %p174, %p175
    %p177 = scmp.le.s32.totalorder 1, %s12
    %p178 = scmp.lt.s32.totalorder %s12, 3
    %p179 = pnand %p177, %p178
    %p180 = pneg %p179
    // Predicated region
    $region9: #{discriminator_forward.1} parent=5 // pred_check
      _
    $region10: #{discriminator_forward.1} parent=5 // pred_check_branch
      %182 = sbr.rel (%p179) target = $region12
    $region11: #{discriminator_forward.1} parent=5 // pred_region
      %s183 = ssub.s32 %s12, 1
      // Predicated region
      $region13: #{discriminator_forward.1} parent=11 // pred_check
        %p184 = pneg %p59
      $region14: #{discriminator_forward.1} parent=11 // pred_check_branch
        %186 = sbr.rel (%p184) target = $region16
      $region15: #{discriminator_forward.1} parent=11 // pred_region
        _
      $region16: #{discriminator_forward.1} parent=11 // pred_fallthru
        _
      // Predicated region
      $region17: #{discriminator_forward.1} parent=11 // pred_check
        %p187 = pneg %p80
      $region18: #{discriminator_forward.1} parent=11 // pred_check_branch
        %189 = sbr.rel (%p187) target = $region20
      $region19: #{discriminator_forward.1} parent=11 // pred_region
        _
      $region20: #{discriminator_forward.1} parent=11 // pred_fallthru
        _
      // Predicated region
      $region21: #{discriminator_forward.1} parent=11 // pred_check
        %p190 = pneg %p101
      $region22: #{discriminator_forward.1} parent=11 // pred_check_branch
        %192 = sbr.rel (%p190) target = $region24
      $region23: #{discriminator_forward.1} parent=11 // pred_region
        _
      $region24: #{discriminator_forward.1} parent=11 // pred_fallthru
        _
      // Predicated region
      $region25: #{discriminator_forward.1} parent=11 // pred_check
        %p193 = pneg %p122
      $region26: #{discriminator_forward.1} parent=11 // pred_check_branch
        %195 = sbr.rel (%p193) target = $region28
      $region27: #{discriminator_forward.1} parent=11 // pred_region
        _
      $region28: #{discriminator_forward.1} parent=11 // pred_fallthru
        _
      // Predicated region
      $region29: #{discriminator_forward.1} parent=11 // pred_check
        %p196 = pneg %p143
      $region30: #{discriminator_forward.1} parent=11 // pred_check_branch
        %198 = sbr.rel (%p196) target = $region32
      $region31: #{discriminator_forward.1} parent=11 // pred_region
        _
      $region32: #{discriminator_forward.1} parent=11 // pred_fallthru
        _
    $region12: #{discriminator_forward.1} parent=5 // pred_fallthru
      _
    %p199 = scmp.lt.s32.totalorder %s12, 2
    // Predicated region
    $region33: #{discriminator_forward.1} parent=5 // pred_check
      %p200 = pneg %p199
    $region34: #{discriminator_forward.1} parent=5 // pred_check_branch
      %202 = sbr.rel (%p200) target = $region36
    $region35: #{discriminator_forward.1} parent=5 // pred_region
      // Predicated region
      $region37: #{discriminator_forward.1} parent=35 // pred_check
        %p203 = pneg %p32
      $region38: #{discriminator_forward.1} parent=35 // pred_check_branch
        %205 = sbr.rel (%p203) target = $region40
      $region39: #{discriminator_forward.1} parent=35 // pred_region
        %s206 = smul.u32 4, %s12
        %p207 = scmp.lt.s32.totalorder %s206, 7
        %s208 = scalar_select %p207, %s206, 7
        %s209 = smul.addr %s208, 8
        %s210 = scalar_lea.vmem %s0, %s209
        %s211 = smul.u32 4, %s12
      $region40: #{discriminator_forward.1} parent=35 // pred_fallthru
        _
    $region36: #{discriminator_forward.1} parent=5 // pred_fallthru
      _
    %p212 = scmp.le.s32.totalorder 1, %s12
    %p213 = scmp.lt.s32.totalorder %s12, 3
    %p214 = pnand %p212, %p213
    %p215 = pneg %p214
    // Predicated region
    $region41: #{discriminator_forward.1} parent=5 // pred_check
      _
    $region42: #{discriminator_forward.1} parent=5 // pred_check_branch
      %217 = sbr.rel (%p214) target = $region44
    $region43: #{discriminator_forward.1} parent=5 // pred_region
      %s218 = ssub.s32 %s12, 1
      %s219 = smul.u32 4, %s17
      %p220 = scmp.lt.s32.totalorder %s219, 7
      %s221 = scalar_select %p220, %s219, 7
      %s222 = smul.addr %s221, 8
      %s223 = scalar_lea.vmem %s0, %s222
      %p224 = pneg %p38
      %p225 = pneg %p35
      %p226 = pneg %p59
      %p227 = pneg %p56
      %p228 = pneg %p80
      %p229 = pneg %p77
      %p230 = pneg %p101
      %p231 = pneg %p98
      %p232 = pneg %p122
      %p233 = pneg %p119
      %p234 = pneg %p143
      %p235 = pneg %p140
      %p236 = pneg %p169
      %p237 = pneg %p166
      %s238 = smul.u32 4, %s17
      %p239 = scmp.lt.s32.totalorder %s238, 7
      %s240 = scalar_select %p239, %s238, 7
      %s241 = smul.addr %s240, 8
      %s242 = scalar_lea.vmem %s6, %s241
      %s243 = smul.u32 4, %s17
      %p244 = scmp.lt.s32.totalorder %s243, 7
      %s245 = scalar_select %p244, %s243, 7
      %s246 = smul.addr %s245, 8
      %s247 = scalar_lea.vmem %s0, %s246
      %s248 = smul.u32 4, %s17
      %s249 = smul.u32 4, %s17
      %p250 = scmp.lt.s32.totalorder %s249, 7
      %s251 = scalar_select %p250, %s249, 7
      %s252 = smul.addr %s251, 8
      %s253 = scalar_lea.vmem %s6, %s252
      %s254 = smul.u32 4, %s17
      %v256 = vld [vmem:[%s5] sm:$0xff]
      %v257 = vld [vmem:[%s247] sm:$0xff]
      %v258 = vld [vmem:[%s247 + $0x8] sm:$0xff]
      %v259 = vld [vmem:[%s247 + $0x10] sm:$0xff]
      %v260 = vld [vmem:[%s247 + $0x18] sm:$0xff]
      %v261 = vpack.c.bf16 %v258, %v257
      %v262 = vpack.c.bf16 %v260, %v259
      %v263 = vld [vmem:[%s1] sm:$0xf]
      %v264 = vld [vmem:[%s1 + $0x4] sm:$0xf]
      %v265 = vlaneseq
      %v266 = vshrl.u32 %v265, 7
      %v267 = vsub.s32 0, %v266
      %v268 = vrot.slane %v256, %v267
      %v271 = vunpack.c.l.b16 %v263
      %v272 = vunpack.c.l.b16 %v264
      %v273 = vpack.c.b16 %v272, %v271
      %vm275 = vcmask 130048
      %v277 = vsel %vm275, %v261, 0
      %v280 = vsel %vm275, %v262, 0
      %282 = vmatprep.subr.bf16.mxu0 0
      %283 = vmatpush1.bf16.msra.mxu0 %v273
      %284 = vmatprep.subr.bf16.mxu0 0
      %285 = vmatpush1.bf16.msra.mxu0 0
      %286 = vmatprep.subr.bf16.mxu0 0
      %287 = vmatpush1.bf16.msra.mxu0 0
      %288 = vmatprep.subr.bf16.mxu0 0
      %289 = vmatpush1.bf16.msra.mxu0 0
      %290 = vmatprep.subr.bf16.mxu0 0
      %291 = vmatpush1.bf16.msra.mxu0 0
      %292 = vmatprep.subr.bf16.mxu0 0
      %293 = vmatpush1.bf16.msra.mxu0 0
      %294 = vmatprep.subr.bf16.mxu0 0
      %295 = vmatpush1.bf16.msra.mxu0 0
      %296 = vmatprep.subr.bf16.mxu0 0
      %297 = vmatpush1.bf16.msra.mxu0 0
      %298 = vmatprep.subr.bf16.mxu0 0
      %299 = vmatpush1.bf16.msra.mxu0 0
      %300 = vmatprep.subr.bf16.mxu0 0
      %301 = vmatpush1.bf16.msra.mxu0 0
      %302 = vmatprep.subr.bf16.mxu0 0
      %303 = vmatpush1.bf16.msra.mxu0 0
      %304 = vmatprep.subr.bf16.mxu0 0
      %305 = vmatpush1.bf16.msra.mxu0 0
      %306 = vmatprep.subr.bf16.mxu0 0
      %307 = vmatpush1.bf16.msra.mxu0 0
      %308 = vmatprep.subr.bf16.mxu0 0
      %309 = vmatpush1.bf16.msra.mxu0 0
      %310 = vmatprep.subr.bf16.mxu0 0
      %311 = vmatpush1.bf16.msra.mxu0 0
      %312 = vmatprep.subr.bf16.mxu0 0
      %313 = vmatpush1.bf16.msra.mxu0 0
      %314 = vmatprep.mubr.bf16.mxu0 0
      %315 = vmatmul.mubr.bf16.gmra.mrb[0].mxu0 %v277
      %v316 = vpop.f32.mrb[0].mxu0
      %v317 = vadd.f32 %v268, %v316
      %v318 = vpop.f32.mrb[0].mxu0
      %v319 = vpop.f32.mrb[0].mxu0
      %v320 = vadd.f32 %v268, %v319
      %v321 = vpop.f32.mrb[0].mxu0
      %322 = vmatprep.mubr.bf16.mxu0 0
      %323 = vmatmul.mubr.bf16.gmra.mrb[0].mxu0 %v280
      %v324 = vpop.f32.mrb[0].mxu0
      %v325 = vadd.f32 %v268, %v324
      %v326 = vpop.f32.mrb[0].mxu0
      %v327 = vpop.f32.mrb[0].mxu0
      %v328 = vadd.f32 %v268, %v327
      %v329 = vpop.f32.mrb[0].mxu0
      %330 = vdwg.mxu0
      %v331 = vmax.f32 %v317, 0.0
      %v332 = vmax.f32 %v320, 0.0
      %v333 = vmax.f32 %v325, 0.0
      %v334 = vmax.f32 %v328, 0.0
      %v335 = vpack.c.bf16 %v332, %v331
      %v336 = vpack.c.bf16 %v334, %v333
      %v337 = vld [vmem:[%s2] sm:$0xf]
      %v338 = vld [vmem:[%s2 + $0x4] sm:$0xf]
      %v339 = vld [vmem:[%s2 + $0x8] sm:$0xf]
      %v340 = vld [vmem:[%s2 + $0xc] sm:$0xf]
      %v341 = vld [vmem:[%s2 + $0x10] sm:$0xf]
      %v342 = vld [vmem:[%s2 + $0x14] sm:$0xf]
      %v343 = vld [vmem:[%s2 + $0x18] sm:$0xf]
      %v344 = vld [vmem:[%s2 + $0x1c] sm:$0xf]
      %v345 = vld [vmem:[%s2 + $0x20] sm:$0xf]
      %v346 = vld [vmem:[%s2 + $0x24] sm:$0xf]
      %v347 = vld [vmem:[%s2 + $0x28] sm:$0xf]
      %v348 = vld [vmem:[%s2 + $0x2c] sm:$0xf]
      %v349 = vld [vmem:[%s2 + $0x30] sm:$0xf]
      %v350 = vld [vmem:[%s2 + $0x34] sm:$0xf]
      %v351 = vld [vmem:[%s2 + $0x38] sm:$0xf]
      %v352 = vld [vmem:[%s2 + $0x3c] sm:$0xf]
      %v353 = vlaneseq
      %v354 = vshrl.u32 %v353, 7
      %v355 = vsub.s32 1, %v354
      %v356 = vrot.slane %v256, %v355
      %v373 = vunpack.c.l.b16 %v337
      %v374 = vunpack.c.l.b16 %v338
      %v375 = vunpack.c.l.b16 %v339
      %v376 = vunpack.c.l.b16 %v340
      %v377 = vunpack.c.l.b16 %v341
      %v378 = vunpack.c.l.b16 %v342
      %v379 = vunpack.c.l.b16 %v343
      %v380 = vunpack.c.l.b16 %v344
      %v381 = vunpack.c.l.b16 %v345
      %v382 = vunpack.c.l.b16 %v346
      %v383 = vunpack.c.l.b16 %v347
      %v384 = vunpack.c.l.b16 %v348
      %v385 = vunpack.c.l.b16 %v349
      %v386 = vunpack.c.l.b16 %v350
      %v387 = vunpack.c.l.b16 %v351
      %v388 = vunpack.c.l.b16 %v352
      %v389 = vpack.c.b16 %v374, %v373
      %v390 = vpack.c.b16 %v376, %v375
      %v391 = vpack.c.b16 %v378, %v377
      %v392 = vpack.c.b16 %v380, %v379
      %v393 = vpack.c.b16 %v382, %v381
      %v394 = vpack.c.b16 %v384, %v383
      %v395 = vpack.c.b16 %v386, %v385
      %v396 = vpack.c.b16 %v388, %v387
      %405 = vmatprep.subr.bf16.mxu0 0
      %406 = vmatpush1.bf16.msra.mxu0 %v389
      %407 = vmatprep.subr.bf16.mxu0 0
      %408 = vmatpush1.bf16.msra.mxu0 %v390
      %409 = vmatprep.subr.bf16.mxu0 0
      %410 = vmatpush1.bf16.msra.mxu0 %v391
      %411 = vmatprep.subr.bf16.mxu0 0
      %412 = vmatpush1.bf16.msra.mxu0 %v392
      %413 = vmatprep.subr.bf16.mxu0 0
      %414 = vmatpush1.bf16.msra.mxu0 %v393
      %415 = vmatprep.subr.bf16.mxu0 0
      %416 = vmatpush1.bf16.msra.mxu0 %v394
      %417 = vmatprep.subr.bf16.mxu0 0
      %418 = vmatpush1.bf16.msra.mxu0 %v395
      %419 = vmatprep.subr.bf16.mxu0 0
      %420 = vmatpush1.bf16.msra.mxu0 %v396
      %421 = vmatprep.subr.bf16.mxu0 0
      %422 = vmatpush1.bf16.msra.mxu0 0
      %423 = vmatprep.subr.bf16.mxu0 0
      %424 = vmatpush1.bf16.msra.mxu0 0
      %425 = vmatprep.subr.bf16.mxu0 0
      %426 = vmatpush1.bf16.msra.mxu0 0
      %427 = vmatprep.subr.bf16.mxu0 0
      %428 = vmatpush1.bf16.msra.mxu0 0
      %429 = vmatprep.subr.bf16.mxu0 0
      %430 = vmatpush1.bf16.msra.mxu0 0
      %431 = vmatprep.subr.bf16.mxu0 0
      %432 = vmatpush1.bf16.msra.mxu0 0
      %433 = vmatprep.subr.bf16.mxu0 0
      %434 = vmatpush1.bf16.msra.mxu0 0
      %435 = vmatprep.subr.bf16.mxu0 0
      %436 = vmatpush1.bf16.msra.mxu0 0
      %437 = vmatprep.mubr.bf16.mxu0 0
      %438 = vmatmul.mubr.bf16.gmra.mrb[0].mxu0 %v335
      %v439 = vpop.f32.mrb[0].mxu0
      %v440 = vadd.f32 %v356, %v439
      %v441 = vpop.f32.mrb[0].mxu0
      %v442 = vpop.f32.mrb[0].mxu0
      %v443 = vadd.f32 %v356, %v442
      %v444 = vpop.f32.mrb[0].mxu0
      %445 = vmatprep.mubr.bf16.mxu0 0
      %446 = vmatmul.mubr.bf16.gmra.mrb[0].mxu0 %v336
      %v447 = vpop.f32.mrb[0].mxu0
      %v448 = vadd.f32 %v356, %v447
      %v449 = vpop.f32.mrb[0].mxu0
      %v450 = vpop.f32.mrb[0].mxu0
      %v451 = vadd.f32 %v356, %v450
      %v452 = vpop.f32.mrb[0].mxu0
      %453 = vdwg.mxu0
      %v454 = vmax.f32 %v440, 0.0
      %v455 = vmax.f32 %v443, 0.0
      %v456 = vmax.f32 %v448, 0.0
      %v457 = vmax.f32 %v451, 0.0
      %v458 = vpack.c.bf16 %v455, %v454
      %v459 = vpack.c.bf16 %v457, %v456
      %v460 = vld [vmem:[%s3] sm:$0xf]
      %v461 = vld [vmem:[%s3 + $0x4] sm:$0xf]
      %v462 = vld [vmem:[%s3 + $0x8] sm:$0xf]
      %v463 = vld [vmem:[%s3 + $0xc] sm:$0xf]
      %v464 = vld [vmem:[%s3 + $0x10] sm:$0xf]
      %v465 = vld [vmem:[%s3 + $0x14] sm:$0xf]
      %v466 = vld [vmem:[%s3 + $0x18] sm:$0xf]
      %v467 = vld [vmem:[%s3 + $0x1c] sm:$0xf]
      %v468 = vld [vmem:[%s3 + $0x20] sm:$0xf]
      %v469 = vld [vmem:[%s3 + $0x24] sm:$0xf]
      %v470 = vld [vmem:[%s3 + $0x28] sm:$0xf]
      %v471 = vld [vmem:[%s3 + $0x2c] sm:$0xf]
      %v472 = vld [vmem:[%s3 + $0x30] sm:$0xf]
      %v473 = vld [vmem:[%s3 + $0x34] sm:$0xf]
      %v474 = vld [vmem:[%s3 + $0x38] sm:$0xf]
      %v475 = vld [vmem:[%s3 + $0x3c] sm:$0xf]
      %v476 = vlaneseq
      %v477 = vshrl.u32 %v476, 7
      %v478 = vsub.s32 2, %v477
      %v479 = vrot.slane %v256, %v478
      %v496 = vunpack.c.l.b16 %v460
      %v497 = vunpack.c.l.b16 %v461
      %v498 = vunpack.c.l.b16 %v462
      %v499 = vunpack.c.l.b16 %v463
      %v500 = vunpack.c.l.b16 %v464
      %v501 = vunpack.c.l.b16 %v465
      %v502 = vunpack.c.l.b16 %v466
      %v503 = vunpack.c.l.b16 %v467
      %v504 = vunpack.c.l.b16 %v468
      %v505 = vunpack.c.l.b16 %v469
      %v506 = vunpack.c.l.b16 %v470
      %v507 = vunpack.c.l.b16 %v471
      %v508 = vunpack.c.l.b16 %v472
      %v509 = vunpack.c.l.b16 %v473
      %v510 = vunpack.c.l.b16 %v474
      %v511 = vunpack.c.l.b16 %v475
      %v512 = vpack.c.b16 %v497, %v496
      %v513 = vpack.c.b16 %v499, %v498
      %v514 = vpack.c.b16 %v501, %v500
      %v515 = vpack.c.b16 %v503, %v502
      %v516 = vpack.c.b16 %v505, %v504
      %v517 = vpack.c.b16 %v507, %v506
      %v518 = vpack.c.b16 %v509, %v508
      %v519 = vpack.c.b16 %v511, %v510
      %528 = vmatprep.subr.bf16.mxu0 0
      %529 = vmatpush1.bf16.msra.mxu0 %v512
      %530 = vmatprep.subr.bf16.mxu0 0
      %531 = vmatpush1.bf16.msra.mxu0 %v513
      %532 = vmatprep.subr.bf16.mxu0 0
      %533 = vmatpush1.bf16.msra.mxu0 %v514
      %534 = vmatprep.subr.bf16.mxu0 0
      %535 = vmatpush1.bf16.msra.mxu0 %v515
      %536 = vmatprep.subr.bf16.mxu0 0
      %537 = vmatpush1.bf16.msra.mxu0 %v516
      %538 = vmatprep.subr.bf16.mxu0 0
      %539 = vmatpush1.bf16.msra.mxu0 %v517
      %540 = vmatprep.subr.bf16.mxu0 0
      %541 = vmatpush1.bf16.msra.mxu0 %v518
      %542 = vmatprep.subr.bf16.mxu0 0
      %543 = vmatpush1.bf16.msra.mxu0 %v519
      %544 = vmatprep.subr.bf16.mxu0 0
      %545 = vmatpush1.bf16.msra.mxu0 0
      %546 = vmatprep.subr.bf16.mxu0 0
      %547 = vmatpush1.bf16.msra.mxu0 0
      %548 = vmatprep.subr.bf16.mxu0 0
      %549 = vmatpush1.bf16.msra.mxu0 0
      %550 = vmatprep.subr.bf16.mxu0 0
      %551 = vmatpush1.bf16.msra.mxu0 0
      %552 = vmatprep.subr.bf16.mxu0 0
      %553 = vmatpush1.bf16.msra.mxu0 0
      %554 = vmatprep.subr.bf16.mxu0 0
      %555 = vmatpush1.bf16.msra.mxu0 0
      %556 = vmatprep.subr.bf16.mxu0 0
      %557 = vmatpush1.bf16.msra.mxu0 0
      %558 = vmatprep.subr.bf16.mxu0 0
      %559 = vmatpush1.bf16.msra.mxu0 0
      %560 = vmatprep.mubr.bf16.mxu0 0
      %561 = vmatmul.mubr.bf16.gmra.mrb[0].mxu0 %v458
      %v562 = vpop.f32.mrb[0].mxu0
      %v563 = vadd.f32 %v479, %v562
      %v564 = vpop.f32.mrb[0].mxu0
      %v565 = vpop.f32.mrb[0].mxu0
      %v566 = vadd.f32 %v479, %v565
      %v567 = vpop.f32.mrb[0].mxu0
      %568 = vmatprep.mubr.bf16.mxu0 0
      %569 = vmatmul.mubr.bf16.gmra.mrb[0].mxu0 %v459
      %v570 = vpop.f32.mrb[0].mxu0
      %v571 = vadd.f32 %v479, %v570
      %v572 = vpop.f32.mrb[0].mxu0
      %v573 = vpop.f32.mrb[0].mxu0
      %v574 = vadd.f32 %v479, %v573
      %v575 = vpop.f32.mrb[0].mxu0
      %576 = vdwg.mxu0
      %v577 = vmax.f32 %v563, 0.0
      %v578 = vmax.f32 %v566, 0.0
      %v579 = vmax.f32 %v571, 0.0
      %v580 = vmax.f32 %v574, 0.0
      %v581 = vpack.c.bf16 %v578, %v577
      %v582 = vpack.c.bf16 %v580, %v579
      %v583 = vld [vmem:[%s4] sm:$0xf]
      %v584 = vld [vmem:[%s4 + $0x4] sm:$0xf]
      %v585 = vld [vmem:[%s4 + $0x8] sm:$0xf]
      %v586 = vld [vmem:[%s4 + $0xc] sm:$0xf]
      %v587 = vld [vmem:[%s4 + $0x10] sm:$0xf]
      %v588 = vld [vmem:[%s4 + $0x14] sm:$0xf]
      %v589 = vld [vmem:[%s4 + $0x18] sm:$0xf]
      %v590 = vld [vmem:[%s4 + $0x1c] sm:$0xf]
      %v591 = vld [vmem:[%s4 + $0x20] sm:$0xf]
      %v592 = vld [vmem:[%s4 + $0x24] sm:$0xf]
      %v593 = vld [vmem:[%s4 + $0x28] sm:$0xf]
      %v594 = vld [vmem:[%s4 + $0x2c] sm:$0xf]
      %v595 = vld [vmem:[%s4 + $0x30] sm:$0xf]
      %v596 = vld [vmem:[%s4 + $0x34] sm:$0xf]
      %v597 = vld [vmem:[%s4 + $0x38] sm:$0xf]
      %v598 = vld [vmem:[%s4 + $0x3c] sm:$0xf]
      %v615 = vunpack.c.l.b16 %v583
      %v616 = vunpack.c.l.b16 %v584
      %v617 = vunpack.c.l.b16 %v585
      %v618 = vunpack.c.l.b16 %v586
      %v619 = vunpack.c.l.b16 %v587
      %v620 = vunpack.c.l.b16 %v588
      %v621 = vunpack.c.l.b16 %v589
      %v622 = vunpack.c.l.b16 %v590
      %v623 = vunpack.c.l.b16 %v591
      %v624 = vunpack.c.l.b16 %v592
      %v625 = vunpack.c.l.b16 %v593
      %v626 = vunpack.c.l.b16 %v594
      %v627 = vunpack.c.l.b16 %v595
      %v628 = vunpack.c.l.b16 %v596
      %v629 = vunpack.c.l.b16 %v597
      %v630 = vunpack.c.l.b16 %v598
      %v631 = vpack.c.b16 %v616, %v615
      %v632 = vpack.c.b16 %v618, %v617
      %v633 = vpack.c.b16 %v620, %v619
      %v634 = vpack.c.b16 %v622, %v621
      %v635 = vpack.c.b16 %v624, %v623
      %v636 = vpack.c.b16 %v626, %v625
      %v637 = vpack.c.b16 %v628, %v627
      %v638 = vpack.c.b16 %v630, %v629
      %647 = vmatprep.subr.bf16.mxu0 0
      %648 = vmatpush1.bf16.msra.mxu0 %v631
      %649 = vmatprep.subr.bf16.mxu0 0
      %650 = vmatpush1.bf16.msra.mxu0 %v632
      %651 = vmatprep.subr.bf16.mxu0 0
      %652 = vmatpush1.bf16.msra.mxu0 %v633
      %653 = vmatprep.subr.bf16.mxu0 0
      %654 = vmatpush1.bf16.msra.mxu0 %v634
      %655 = vmatprep.subr.bf16.mxu0 0
      %656 = vmatpush1.bf16.msra.mxu0 %v635
      %657 = vmatprep.subr.bf16.mxu0 0
      %658 = vmatpush1.bf16.msra.mxu0 %v636
      %659 = vmatprep.subr.bf16.mxu0 0
      %660 = vmatpush1.bf16.msra.mxu0 %v637
      %661 = vmatprep.subr.bf16.mxu0 0
      %662 = vmatpush1.bf16.msra.mxu0 %v638
      %663 = vmatprep.subr.bf16.mxu0 0
      %664 = vmatpush1.bf16.msra.mxu0 0
      %665 = vmatprep.subr.bf16.mxu0 0
      %666 = vmatpush1.bf16.msra.mxu0 0
      %667 = vmatprep.subr.bf16.mxu0 0
      %668 = vmatpush1.bf16.msra.mxu0 0
      %669 = vmatprep.subr.bf16.mxu0 0
      %670 = vmatpush1.bf16.msra.mxu0 0
      %671 = vmatprep.subr.bf16.mxu0 0
      %672 = vmatpush1.bf16.msra.mxu0 0
      %673 = vmatprep.subr.bf16.mxu0 0
      %674 = vmatpush1.bf16.msra.mxu0 0
      %675 = vmatprep.subr.bf16.mxu0 0
      %676 = vmatpush1.bf16.msra.mxu0 0
      %677 = vmatprep.subr.bf16.mxu0 0
      %678 = vmatpush1.bf16.msra.mxu0 0
      %679 = vmatprep.mubr.bf16.mxu0 0
      %680 = vmatmul.mubr.bf16.gmra.mrb[0].mxu0 %v581
      %v681 = vpop.f32.mrb[0].mxu0
      %v682 = vadd.f32 0.0, %v681
      %v683 = vpop.f32.mrb[0].mxu0
      %v684 = vpop.f32.mrb[0].mxu0
      %v685 = vadd.f32 0.0, %v684
      %v686 = vpop.f32.mrb[0].mxu0
      %687 = vmatprep.mubr.bf16.mxu0 0
      %688 = vmatmul.mubr.bf16.gmra.mrb[0].mxu0 %v582
      %v689 = vpop.f32.mrb[0].mxu0
      %v690 = vadd.f32 0.0, %v689
      %v691 = vpop.f32.mrb[0].mxu0
      %v692 = vpop.f32.mrb[0].mxu0
      %v693 = vadd.f32 0.0, %v692
      %v694 = vpop.f32.mrb[0].mxu0
      %695 = vdwg.mxu0
      %v696 = vlaneseq
      %v697 = vshrl.u32 %v696, 7
      %v698 = vsub.s32 3, %v697
      %v699 = vrot.slane %v256, %v698
      %v700 = vadd.f32 %v682, %v699
      %v701 = vadd.f32 %v685, %v699
      %v702 = vadd.f32 %v690, %v699
      %v703 = vadd.f32 %v693, %v699
      %vm704 = vcmask 7168
      %705 = vst.msk [vmem:[%s253] sm:$0xff] %vm704, %v700
      %706 = vst.msk [vmem:[%s253 + $0x8] sm:$0xff] %vm704, %v701
      %707 = vst.msk [vmem:[%s253 + $0x10] sm:$0xff] %vm704, %v702
      %708 = vst.msk [vmem:[%s253 + $0x18] sm:$0xff] %vm704, %v703
      %s709 = smul.u32 4, %s17
      %p710 = scmp.lt.s32.totalorder %s709, 7
      %s711 = scalar_select %p710, %s709, 7
      %s712 = smul.addr %s711, 8
      %s713 = scalar_lea.vmem %s6, %s712
      // Predicated region
      $region45: #{discriminator_forward.1} parent=43 // pred_check
        %p714 = pneg %p166
      $region46: #{discriminator_forward.1} parent=43 // pred_check_branch
        %716 = sbr.rel (%p714) target = $region48
      $region47: #{discriminator_forward.1} parent=43 // pred_region
        %s717 = smul.u32 4, %s17
      $region48: #{discriminator_forward.1} parent=43 // pred_fallthru
        _
    $region44: #{discriminator_forward.1} parent=5 // pred_fallthru
      _
    %p718 = scmp.le.s32.totalorder 2, %s12
    // Predicated region
    $region49: #{discriminator_forward.1} parent=5 // pred_check
      %p719 = pneg %p718
    $region50: #{discriminator_forward.1} parent=5 // pred_check_branch
      %721 = sbr.rel (%p719) target = $region52
    $region51: #{discriminator_forward.1} parent=5 // pred_region
      %s722 = ssub.s32 %s12, 2
      // Predicated region
      $region53: #{discriminator_forward.1} parent=51 // pred_check
        %p723 = pneg %p172
      $region54: #{discriminator_forward.1} parent=51 // pred_check_branch
        %725 = sbr.rel (%p723) target = $region56
      $region55: #{discriminator_forward.1} parent=51 // pred_region
        %s726 = smul.u32 4, %s18
        %p727 = scmp.lt.s32.totalorder %s726, 7
        %s728 = scalar_select %p727, %s726, 7
        %s729 = smul.addr %s728, 8
        %s730 = scalar_lea.vmem %s6, %s729
      $region56: #{discriminator_forward.1} parent=51 // pred_fallthru
        _
    $region52: #{discriminator_forward.1} parent=5 // pred_fallthru
      _
  $region6: #{discriminator_forward.1} parent=0 // loop_footer
    %s16 = sadd.s32 1, %s12
  $region7: #{discriminator_forward.1} parent=0 // loop_footer_branch
    %11 = sbr.rel target = $region3
  $region8: #{discriminator_forward.1} parent=0 // loop_exit
    _

</llo_original>
